<compile_context>
chip_gen: v5e
topology: v5e:2x2
jax: 0.10.0
libtpu: 0.0.40
codegen_flags: <defaults>
</compile_context>

<pallas_src>
import jax
import jax.numpy as jnp
from jax.experimental import pallas as pl
from jax.experimental.pallas import tpu as pltpu


def _log_sigmoid(x):
    # logsigmoid(x) = min(x, 0) - log(1 + exp(-|x|))   (numerically stable)
    return jnp.minimum(x, 0.0) - jnp.log(1.0 + jnp.exp(-jnp.abs(x)))


def _skipgram_kernel(data_ref, emb0_ref, emb1t_ref, loss_ref):
    """One batch tile per grid step.

    data_ref  : [tile_b, 2 + 2N] int32 (VMEM)  -- word | ctx | neg idx | neg mask
    emb0_ref  : [Vp, Dp] bf16 (VMEM, resident) -- input-word table (padded)
    emb1t_ref : [Dp, Vp] bf16 (VMEM, resident) -- transposed ctx/neg table (padded)
    loss_ref  : [1, 2] f32 (SMEM)              -- (pos_loss_partial, neg_loss_partial)
    """
    n_neg = (data_ref.shape[1] - 2) // 2
    vocab_p = emb0_ref.shape[0]

    data = data_ref[...]                                            # [tile_b, 2+2N] int32

    # Single lane-iota reused for the word one-hot and every lane selection.
    iota_v = jax.lax.broadcasted_iota(jnp.int32, (1, vocab_p), 1)   # [1, Vp]

    # ---- word-embedding gather: one bf16 one-hot matmul on the MXU ----
    w_oh = (iota_v == data[:, 0:1]).astype(jnp.bfloat16)            # [tile_b, Vp]
    w_embs = jnp.dot(w_oh, emb0_ref[...],
                     preferred_element_type=jnp.float32)            # [tile_b, Dp] (exact bf16 values)

    # ---- fused score matrix: <w_b, emb1_v> for every vocab row in ONE matmul ----
    s = jnp.dot(w_embs.astype(jnp.bfloat16), emb1t_ref[...],
                preferred_element_type=jnp.float32)                 # [tile_b, Vp] f32

    # ---- positive logits: lane-masked reduction of S at ctx_idx ----
    pos_sel = iota_v == data[:, 1:2]                                # [tile_b, Vp] bool
    pos_ips = jnp.sum(jnp.where(pos_sel, s, 0.0), axis=-1,
                      keepdims=True)                                # [tile_b, 1]
    loss_ref[0, 0] = jnp.sum(-_log_sigmoid(pos_ips))

    # ---- negative logits: per-negative lane selection, mask folded into the
    #      selection (masked logit -> 0 -> contributes -logsigmoid(0) = ln 2,
    #      matching the reference semantics). Static unroll over N (small). ----
    neg_loss = jnp.float32(0.0)
    for j in range(n_neg):
        sel_j = ((iota_v == data[:, 2 + j:3 + j]).astype(jnp.float32)
                 * data[:, 2 + n_neg + j:3 + n_neg + j].astype(jnp.float32))  # [tile_b, Vp]
        logit_j = jnp.sum(s * sel_j, axis=-1, keepdims=True)        # [tile_b, 1]
        neg_loss = neg_loss + jnp.sum(-_log_sigmoid(-logit_j))
    loss_ref[0, 1] = neg_loss


def skipgram_forward_pallas(data, emb0, emb1, negative, *, tile_b=None):
    """data: int [B, 2 + 2*negative]; emb0/emb1: f32 [V, D]. Returns (pos_loss, neg_loss)."""
    B, W = data.shape
    assert W == 2 + 2 * negative
    V, D = emb0.shape
    assert emb1.shape == (V, D)

    if tile_b is None:
        tile_b = B
    assert B % tile_b == 0, "batch must be divisible by tile_b"
    assert tile_b == B or tile_b % 8 == 0, \
        "tile_b must equal B or be a multiple of 8 (sublane constraint)"
    num_tiles = B // tile_b

    # Lane-dense padding: vocab (one-hot lane dim / matmul K & N) and embed dim
    # padded to multiples of 128.  Zero padding is exact: padded table rows are
    # never selected and padded embed columns contribute 0 to every score.
    vocab_p = pl.cdiv(V, 128) * 128
    d_p = pl.cdiv(D, 128) * 128

    emb0_p = jnp.pad(emb0, ((0, vocab_p - V), (0, d_p - D))).astype(jnp.bfloat16)
    # Transposed ctx/neg table so S = w @ emb1^T is a single lane-dense matmul.
    emb1t_p = jnp.pad(emb1, ((0, vocab_p - V), (0, d_p - D))).astype(jnp.bfloat16).T
    data_i32 = data.astype(jnp.int32)

    # Explicit scoped-VMEM budget: (double-buffered) resident tables + data
    # block + [tile_b, Vp] score / one-hot / selection temporaries + headroom.
    table_bytes = 2 * (vocab_p * d_p * 2)                 # two bf16 tables
    temp_bytes = 16 * tile_b * vocab_p * 4                # S + one-hots + selects (generous)
    vmem_limit = min(2 * table_bytes + 2 * tile_b * W * 4 + temp_bytes
                     + 8 * 1024 * 1024,
                     64 * 1024 * 1024)                    # stay within v7x's 64 MiB/TC

    partials = pl.pallas_call(
        _skipgram_kernel,
        out_shape=jax.ShapeDtypeStruct((num_tiles, 2), jnp.float32),
        grid=(num_tiles,),
        in_specs=[
            # one int32 block per batch tile (word/ctx/neg idx + mask columns)
            pl.BlockSpec((tile_b, W), lambda i: (i, 0)),
            # tables: full padded arrays, constant index_map -> resident across steps
            pl.BlockSpec((vocab_p, d_p), lambda i: (0, 0)),
            pl.BlockSpec((d_p, vocab_p), lambda i: (0, 0)),
        ],
        # per-tile scalar partial losses live in SMEM (no lane-sparse VMEM stores)
        out_specs=pl.BlockSpec((1, 2), lambda i: (i, 0),
                               memory_space=pltpu.MemorySpace.SMEM),
        compiler_params=pltpu.CompilerParams(
            dimension_semantics=("parallel",),   # batch tiles split across TCs
            vmem_limit_bytes=int(vmem_limit)),
    )(data_i32, emb0_p, emb1t_p)

    pos_loss = jnp.sum(partials[:, 0])
    neg_loss = jnp.sum(partials[:, 1])
    return pos_loss, neg_loss


def skipgram_forward_ref(data, emb0, emb1, negative):
    """Pure-JAX reference mirroring the PyTorch forward."""
    word_idx = data[:, 0]
    ctx_idx = data[:, 1]
    neg_idx = data[:, 2:2 + negative]
    neg_mask = data[:, 2 + negative:].astype(jnp.float32)
    w = emb0[word_idx]
    c = emb1[ctx_idx]
    n = emb1[neg_idx]
    pos_ips = jnp.sum(w * c, axis=1)
    neg_ips = jnp.einsum('bnd,bd->bn', n, w) * neg_mask
    pos_loss = jnp.sum(-jax.nn.log_sigmoid(pos_ips))
    neg_loss = jnp.sum(-jax.nn.log_sigmoid(-neg_ips))
    return pos_loss, neg_loss


if __name__ == "__main__":
    vocab_size = 64
    embed_dim = 32
    window = 2          # unused in forward, kept for module parity
    negative = 4
    batch = 16          # tile_b defaults to B -> single grid step for the toy config

    keys = jax.random.split(jax.random.PRNGKey(0), 11)
    (k_emb0, k_word, k_ctx, k_neg, k_mask, k_emb1_t,
     k_w2, k_c2, k_n2, k_m2, _) = keys

    # Parameter init per skipGramModel.__init__: emb0 ~ U(-0.5/D, 0.5/D), emb1 = 0
    emb0 = jax.random.uniform(
        k_emb0, (vocab_size, embed_dim), dtype=jnp.float32,
        minval=-0.5 / embed_dim, maxval=0.5 / embed_dim)
    emb1 = jnp.zeros((vocab_size, embed_dim), dtype=jnp.float32)

    word = jax.random.randint(k_word, (batch, 1), 0, vocab_size, dtype=jnp.int32)
    ctx = jax.random.randint(k_ctx, (batch, 1), 0, vocab_size, dtype=jnp.int32)
    neg = jax.random.randint(k_neg, (batch, negative), 0, vocab_size, dtype=jnp.int32)
    mask = jax.random.randint(k_mask, (batch, negative), 0, 2, dtype=jnp.int32)
    data = jnp.concatenate([word, ctx, neg, mask], axis=1)   # [B, 2 + 2*N]

    def bf16_round(t):
        # The kernel's MXU path uses bf16 tables; match that for the
        # tight-tolerance reference comparison.
        return t.astype(jnp.bfloat16).astype(jnp.float32)

    # --- check 1: module's actual init (emb1 = 0), single-tile grid ---
    pos_loss, neg_loss = skipgram_forward_pallas(data, emb0, emb1, negative)
    jax.block_until_ready((pos_loss, neg_loss))
    pos_ref, neg_ref = skipgram_forward_ref(data, bf16_round(emb0), bf16_round(emb1), negative)
    assert jnp.allclose(pos_loss, pos_ref, rtol=1e-5, atol=1e-5), (pos_loss, pos_ref)
    assert jnp.allclose(neg_loss, neg_ref, rtol=1e-5, atol=1e-5), (neg_loss, neg_ref)

    # --- check 2: non-degenerate emb1 table ---
    emb1_t = jax.random.normal(k_emb1_t, (vocab_size, embed_dim), dtype=jnp.float32) * 0.1
    p2, n2 = skipgram_forward_pallas(data, emb0, emb1_t, negative)
    jax.block_until_ready((p2, n2))
    p2r, n2r = skipgram_forward_ref(data, bf16_round(emb0), bf16_round(emb1_t), negative)
    assert jnp.allclose(p2, p2r, rtol=1e-5, atol=1e-5), (p2, p2r)
    assert jnp.allclose(n2, n2r, rtol=1e-5, atol=1e-5), (n2, n2r)

    # sanity vs. full-f32 reference (loose: tables are rounded to bf16 in-kernel)
    p2f, n2f = skipgram_forward_ref(data, emb0, emb1_t, negative)
    assert jnp.allclose(p2, p2f, rtol=1e-2, atol=1e-2), (p2, p2f)
    assert jnp.allclose(n2, n2f, rtol=1e-2, atol=1e-2), (n2, n2f)

    # --- check 3: multi-tile batch grid (exercises the "parallel" batch axis) ---
    batch2 = 32
    data2 = jnp.concatenate([
        jax.random.randint(k_w2, (batch2, 1), 0, vocab_size, dtype=jnp.int32),
        jax.random.randint(k_c2, (batch2, 1), 0, vocab_size, dtype=jnp.int32),
        jax.random.randint(k_n2, (batch2, negative), 0, vocab_size, dtype=jnp.int32),
        jax.random.randint(k_m2, (batch2, negative), 0, 2, dtype=jnp.int32)], axis=1)
    p3, n3 = skipgram_forward_pallas(data2, emb0, emb1_t, negative, tile_b=16)
    jax.block_until_ready((p3, n3))
    p3r, n3r = skipgram_forward_ref(data2, bf16_round(emb0), bf16_round(emb1_t), negative)
    assert jnp.allclose(p3, p3r, rtol=1e-5, atol=1e-5), (p3, p3r)
    assert jnp.allclose(n3, n3r, rtol=1e-5, atol=1e-5), (n3, n3r)

    print("KERNEL_OK")
</pallas_src>

<mosaic_0001>
module attributes {stable_mosaic.version = 11 : i64} {
  func.func @_skipgram_kernel(%arg0: i32, %arg1: memref<16x10xi32, #tpu.memory_space<vmem>>, %arg2: memref<128x128xbf16, #tpu.memory_space<vmem>>, %arg3: memref<128x128xbf16, #tpu.memory_space<vmem>>, %arg4: memref<1x2xf32, #tpu.memory_space<smem>>) attributes {dimension_semantics = [#tpu.dimension_semantics<parallel>], iteration_bounds = array<i64: 1>, scalar_prefetch = 0 : i64, scratch_operands = 0 : i64, tpu.core_type = #tpu.core_type<tc>, window_params = [{transform_indices = @transform_0, window_bounds = array<i64: 16, 10>}, {pipeline_mode = #tpu.pipeline_mode<synchronous>, transform_indices = @transform_1, window_bounds = array<i64: 128, 128>}, {pipeline_mode = #tpu.pipeline_mode<synchronous>, transform_indices = @transform_2, window_bounds = array<i64: 128, 128>}, {transform_indices = @transform_3, window_bounds = array<i64: 1, 2>}]} {
    %c0 = arith.constant 0 : index
    %c0_0 = arith.constant 0 : index
    %0 = vector.load %arg1[%c0, %c0_0] : memref<16x10xi32, #tpu.memory_space<vmem>>, vector<16x10xi32>
    %1 = tpu.iota {dimensions = array<i32: 1>} : vector<1x128xi32>
    %2 = vector.extract_strided_slice %0 {offsets = [0, 0], sizes = [16, 1], strides = [1, 1]} : vector<16x10xi32> to vector<16x1xi32>
    %3 = vector.broadcast %1 : vector<1x128xi32> to vector<16x128xi32>
    %4 = vector.broadcast %2 : vector<16x1xi32> to vector<16x128xi32>
    %5 = arith.cmpi eq, %3, %4 : vector<16x128xi32>
    %6 = arith.extui %5 : vector<16x128xi1> to vector<16x128xi32>
    %7 = arith.sitofp %6 : vector<16x128xi32> to vector<16x128xf32>
    %8 = arith.truncf %7 : vector<16x128xf32> to vector<16x128xbf16>
    %c0_1 = arith.constant 0 : index
    %c0_2 = arith.constant 0 : index
    %9 = vector.load %arg2[%c0_1, %c0_2] : memref<128x128xbf16, #tpu.memory_space<vmem>>, vector<128x128xbf16>
    %cst = arith.constant dense<0.000000e+00> : vector<16x128xf32>
    %10 = tpu.matmul %8, %9, %cst {dimension_numbers = #tpu.dot_dimension_numbers<[1], [0], [0], [1], [0, 0, 1, 1], [], []>} : vector<16x128xbf16>, vector<128x128xbf16>, vector<16x128xf32> -> vector<16x128xf32>
    %11 = arith.truncf %10 : vector<16x128xf32> to vector<16x128xbf16>
    %c0_3 = arith.constant 0 : index
    %c0_4 = arith.constant 0 : index
    %12 = vector.load %arg3[%c0_3, %c0_4] : memref<128x128xbf16, #tpu.memory_space<vmem>>, vector<128x128xbf16>
    %cst_5 = arith.constant dense<0.000000e+00> : vector<16x128xf32>
    %13 = tpu.matmul %11, %12, %cst_5 {dimension_numbers = #tpu.dot_dimension_numbers<[1], [0], [0], [1], [0, 0, 1, 1], [], []>} : vector<16x128xbf16>, vector<128x128xbf16>, vector<16x128xf32> -> vector<16x128xf32>
    %14 = vector.extract_strided_slice %0 {offsets = [0, 1], sizes = [16, 1], strides = [1, 1]} : vector<16x10xi32> to vector<16x1xi32>
    %15 = vector.broadcast %1 : vector<1x128xi32> to vector<16x128xi32>
    %16 = vector.broadcast %14 : vector<16x1xi32> to vector<16x128xi32>
    %17 = arith.cmpi eq, %15, %16 : vector<16x128xi32>
    %cst_6 = arith.constant 0.000000e+00 : f32
    %18 = vector.broadcast %cst_6 : f32 to vector<16x128xf32>
    %19 = arith.select %17, %13, %18 : vector<16x128xi1>, vector<16x128xf32>
    %cst_7 = arith.constant dense<0.000000e+00> : vector<16xf32>
    %20 = vector.multi_reduction <add>, %19, %cst_7 [1] : vector<16x128xf32> to vector<16xf32>
    %21 = vector.shape_cast %20 : vector<16xf32> to vector<16x1xf32>
    %cst_8 = arith.constant 0.000000e+00 : f32
    %22 = vector.broadcast %cst_8 : f32 to vector<16x1xf32>
    %23 = arith.minimumf %21, %22 : vector<16x1xf32>
    %24 = math.absf %21 : vector<16x1xf32>
    %cst_9 = arith.constant 0.000000e+00 : f32
    %25 = vector.broadcast %cst_9 : f32 to vector<16x1xf32>
    %26 = arith.subf %25, %24 : vector<16x1xf32>
    %27 = math.exp %26 : vector<16x1xf32>
    %cst_10 = arith.constant 1.000000e+00 : f32
    %28 = vector.broadcast %cst_10 : f32 to vector<16x1xf32>
    %29 = arith.addf %28, %27 : vector<16x1xf32>
    %30 = math.log %29 : vector<16x1xf32>
    %31 = arith.subf %23, %30 : vector<16x1xf32>
    %cst_11 = arith.constant 0.000000e+00 : f32
    %32 = vector.broadcast %cst_11 : f32 to vector<16x1xf32>
    %33 = arith.subf %32, %31 : vector<16x1xf32>
    %34 = vector.shape_cast %33 : vector<16x1xf32> to vector<1x16x1xf32>
    %cst_12 = arith.constant dense<0.000000e+00> : vector<1xf32>
    %35 = vector.multi_reduction <add>, %34, %cst_12 [1, 2] : vector<1x16x1xf32> to vector<1xf32>
    %36 = vector.shape_cast %35 : vector<1xf32> to vector<1x1x1xf32>
    %37 = vector.extract %36[0, 0, 0] : f32 from vector<1x1x1xf32>
    %c0_13 = arith.constant 0 : index
    %c0_14 = arith.constant 0 : index
    %38 = memref.load %arg4[%c0_13, %c0_14] : memref<1x2xf32, #tpu.memory_space<smem>>
    memref.store %37, %arg4[%c0_13, %c0_14] : memref<1x2xf32, #tpu.memory_space<smem>>
    %39 = vector.extract_strided_slice %0 {offsets = [0, 2], sizes = [16, 1], strides = [1, 1]} : vector<16x10xi32> to vector<16x1xi32>
    %40 = vector.broadcast %1 : vector<1x128xi32> to vector<16x128xi32>
    %41 = vector.broadcast %39 : vector<16x1xi32> to vector<16x128xi32>
    %42 = arith.cmpi eq, %40, %41 : vector<16x128xi32>
    %43 = arith.extui %42 : vector<16x128xi1> to vector<16x128xi32>
    %44 = arith.sitofp %43 : vector<16x128xi32> to vector<16x128xf32>
    %45 = vector.extract_strided_slice %0 {offsets = [0, 6], sizes = [16, 1], strides = [1, 1]} : vector<16x10xi32> to vector<16x1xi32>
    %46 = arith.sitofp %45 : vector<16x1xi32> to vector<16x1xf32>
    %47 = vector.broadcast %46 : vector<16x1xf32> to vector<16x128xf32>
    %48 = arith.mulf %44, %47 : vector<16x128xf32>
    %49 = arith.mulf %13, %48 : vector<16x128xf32>
    %cst_15 = arith.constant dense<0.000000e+00> : vector<16xf32>
    %50 = vector.multi_reduction <add>, %49, %cst_15 [1] : vector<16x128xf32> to vector<16xf32>
    %51 = vector.shape_cast %50 : vector<16xf32> to vector<16x1xf32>
    %cst_16 = arith.constant 0.000000e+00 : f32
    %52 = vector.broadcast %cst_16 : f32 to vector<16x1xf32>
    %53 = arith.subf %52, %51 : vector<16x1xf32>
    %cst_17 = arith.constant 0.000000e+00 : f32
    %54 = vector.broadcast %cst_17 : f32 to vector<16x1xf32>
    %55 = arith.minimumf %53, %54 : vector<16x1xf32>
    %56 = math.absf %53 : vector<16x1xf32>
    %cst_18 = arith.constant 0.000000e+00 : f32
    %57 = vector.broadcast %cst_18 : f32 to vector<16x1xf32>
    %58 = arith.subf %57, %56 : vector<16x1xf32>
    %59 = math.exp %58 : vector<16x1xf32>
    %cst_19 = arith.constant 1.000000e+00 : f32
    %60 = vector.broadcast %cst_19 : f32 to vector<16x1xf32>
    %61 = arith.addf %60, %59 : vector<16x1xf32>
    %62 = math.log %61 : vector<16x1xf32>
    %63 = arith.subf %55, %62 : vector<16x1xf32>
    %cst_20 = arith.constant 0.000000e+00 : f32
    %64 = vector.broadcast %cst_20 : f32 to vector<16x1xf32>
    %65 = arith.subf %64, %63 : vector<16x1xf32>
    %66 = vector.shape_cast %65 : vector<16x1xf32> to vector<1x16x1xf32>
    %cst_21 = arith.constant dense<0.000000e+00> : vector<1xf32>
    %67 = vector.multi_reduction <add>, %66, %cst_21 [1, 2] : vector<1x16x1xf32> to vector<1xf32>
    %68 = vector.shape_cast %67 : vector<1xf32> to vector<1x1x1xf32>
    %69 = vector.extract %68[0, 0, 0] : f32 from vector<1x1x1xf32>
    %cst_22 = arith.constant 0.000000e+00 : f32
    %70 = arith.addf %cst_22, %69 : f32
    %71 = vector.extract_strided_slice %0 {offsets = [0, 3], sizes = [16, 1], strides = [1, 1]} : vector<16x10xi32> to vector<16x1xi32>
    %72 = vector.broadcast %1 : vector<1x128xi32> to vector<16x128xi32>
    %73 = vector.broadcast %71 : vector<16x1xi32> to vector<16x128xi32>
    %74 = arith.cmpi eq, %72, %73 : vector<16x128xi32>
    %75 = arith.extui %74 : vector<16x128xi1> to vector<16x128xi32>
    %76 = arith.sitofp %75 : vector<16x128xi32> to vector<16x128xf32>
    %77 = vector.extract_strided_slice %0 {offsets = [0, 7], sizes = [16, 1], strides = [1, 1]} : vector<16x10xi32> to vector<16x1xi32>
    %78 = arith.sitofp %77 : vector<16x1xi32> to vector<16x1xf32>
    %79 = vector.broadcast %78 : vector<16x1xf32> to vector<16x128xf32>
    %80 = arith.mulf %76, %79 : vector<16x128xf32>
    %81 = arith.mulf %13, %80 : vector<16x128xf32>
    %cst_23 = arith.constant dense<0.000000e+00> : vector<16xf32>
    %82 = vector.multi_reduction <add>, %81, %cst_23 [1] : vector<16x128xf32> to vector<16xf32>
    %83 = vector.shape_cast %82 : vector<16xf32> to vector<16x1xf32>
    %cst_24 = arith.constant 0.000000e+00 : f32
    %84 = vector.broadcast %cst_24 : f32 to vector<16x1xf32>
    %85 = arith.subf %84, %83 : vector<16x1xf32>
    %cst_25 = arith.constant 0.000000e+00 : f32
    %86 = vector.broadcast %cst_25 : f32 to vector<16x1xf32>
    %87 = arith.minimumf %85, %86 : vector<16x1xf32>
    %88 = math.absf %85 : vector<16x1xf32>
    %cst_26 = arith.constant 0.000000e+00 : f32
    %89 = vector.broadcast %cst_26 : f32 to vector<16x1xf32>
    %90 = arith.subf %89, %88 : vector<16x1xf32>
    %91 = math.exp %90 : vector<16x1xf32>
    %cst_27 = arith.constant 1.000000e+00 : f32
    %92 = vector.broadcast %cst_27 : f32 to vector<16x1xf32>
    %93 = arith.addf %92, %91 : vector<16x1xf32>
    %94 = math.log %93 : vector<16x1xf32>
    %95 = arith.subf %87, %94 : vector<16x1xf32>
    %cst_28 = arith.constant 0.000000e+00 : f32
    %96 = vector.broadcast %cst_28 : f32 to vector<16x1xf32>
    %97 = arith.subf %96, %95 : vector<16x1xf32>
    %98 = vector.shape_cast %97 : vector<16x1xf32> to vector<1x16x1xf32>
    %cst_29 = arith.constant dense<0.000000e+00> : vector<1xf32>
    %99 = vector.multi_reduction <add>, %98, %cst_29 [1, 2] : vector<1x16x1xf32> to vector<1xf32>
    %100 = vector.shape_cast %99 : vector<1xf32> to vector<1x1x1xf32>
    %101 = vector.extract %100[0, 0, 0] : f32 from vector<1x1x1xf32>
    %102 = arith.addf %70, %101 : f32
    %103 = vector.extract_strided_slice %0 {offsets = [0, 4], sizes = [16, 1], strides = [1, 1]} : vector<16x10xi32> to vector<16x1xi32>
    %104 = vector.broadcast %1 : vector<1x128xi32> to vector<16x128xi32>
    %105 = vector.broadcast %103 : vector<16x1xi32> to vector<16x128xi32>
    %106 = arith.cmpi eq, %104, %105 : vector<16x128xi32>
    %107 = arith.extui %106 : vector<16x128xi1> to vector<16x128xi32>
    %108 = arith.sitofp %107 : vector<16x128xi32> to vector<16x128xf32>
    %109 = vector.extract_strided_slice %0 {offsets = [0, 8], sizes = [16, 1], strides = [1, 1]} : vector<16x10xi32> to vector<16x1xi32>
    %110 = arith.sitofp %109 : vector<16x1xi32> to vector<16x1xf32>
    %111 = vector.broadcast %110 : vector<16x1xf32> to vector<16x128xf32>
    %112 = arith.mulf %108, %111 : vector<16x128xf32>
    %113 = arith.mulf %13, %112 : vector<16x128xf32>
    %cst_30 = arith.constant dense<0.000000e+00> : vector<16xf32>
    %114 = vector.multi_reduction <add>, %113, %cst_30 [1] : vector<16x128xf32> to vector<16xf32>
    %115 = vector.shape_cast %114 : vector<16xf32> to vector<16x1xf32>
    %cst_31 = arith.constant 0.000000e+00 : f32
    %116 = vector.broadcast %cst_31 : f32 to vector<16x1xf32>
    %117 = arith.subf %116, %115 : vector<16x1xf32>
    %cst_32 = arith.constant 0.000000e+00 : f32
    %118 = vector.broadcast %cst_32 : f32 to vector<16x1xf32>
    %119 = arith.minimumf %117, %118 : vector<16x1xf32>
    %120 = math.absf %117 : vector<16x1xf32>
    %cst_33 = arith.constant 0.000000e+00 : f32
    %121 = vector.broadcast %cst_33 : f32 to vector<16x1xf32>
    %122 = arith.subf %121, %120 : vector<16x1xf32>
    %123 = math.exp %122 : vector<16x1xf32>
    %cst_34 = arith.constant 1.000000e+00 : f32
    %124 = vector.broadcast %cst_34 : f32 to vector<16x1xf32>
    %125 = arith.addf %124, %123 : vector<16x1xf32>
    %126 = math.log %125 : vector<16x1xf32>
    %127 = arith.subf %119, %126 : vector<16x1xf32>
    %cst_35 = arith.constant 0.000000e+00 : f32
    %128 = vector.broadcast %cst_35 : f32 to vector<16x1xf32>
    %129 = arith.subf %128, %127 : vector<16x1xf32>
    %130 = vector.shape_cast %129 : vector<16x1xf32> to vector<1x16x1xf32>
    %cst_36 = arith.constant dense<0.000000e+00> : vector<1xf32>
    %131 = vector.multi_reduction <add>, %130, %cst_36 [1, 2] : vector<1x16x1xf32> to vector<1xf32>
    %132 = vector.shape_cast %131 : vector<1xf32> to vector<1x1x1xf32>
    %133 = vector.extract %132[0, 0, 0] : f32 from vector<1x1x1xf32>
    %134 = arith.addf %102, %133 : f32
    %135 = vector.extract_strided_slice %0 {offsets = [0, 5], sizes = [16, 1], strides = [1, 1]} : vector<16x10xi32> to vector<16x1xi32>
    %136 = vector.broadcast %1 : vector<1x128xi32> to vector<16x128xi32>
    %137 = vector.broadcast %135 : vector<16x1xi32> to vector<16x128xi32>
    %138 = arith.cmpi eq, %136, %137 : vector<16x128xi32>
    %139 = arith.extui %138 : vector<16x128xi1> to vector<16x128xi32>
    %140 = arith.sitofp %139 : vector<16x128xi32> to vector<16x128xf32>
    %141 = vector.extract_strided_slice %0 {offsets = [0, 9], sizes = [16, 1], strides = [1, 1]} : vector<16x10xi32> to vector<16x1xi32>
    %142 = arith.sitofp %141 : vector<16x1xi32> to vector<16x1xf32>
    %143 = vector.broadcast %142 : vector<16x1xf32> to vector<16x128xf32>
    %144 = arith.mulf %140, %143 : vector<16x128xf32>
    %145 = arith.mulf %13, %144 : vector<16x128xf32>
    %cst_37 = arith.constant dense<0.000000e+00> : vector<16xf32>
    %146 = vector.multi_reduction <add>, %145, %cst_37 [1] : vector<16x128xf32> to vector<16xf32>
    %147 = vector.shape_cast %146 : vector<16xf32> to vector<16x1xf32>
    %cst_38 = arith.constant 0.000000e+00 : f32
    %148 = vector.broadcast %cst_38 : f32 to vector<16x1xf32>
    %149 = arith.subf %148, %147 : vector<16x1xf32>
    %cst_39 = arith.constant 0.000000e+00 : f32
    %150 = vector.broadcast %cst_39 : f32 to vector<16x1xf32>
    %151 = arith.minimumf %149, %150 : vector<16x1xf32>
    %152 = math.absf %149 : vector<16x1xf32>
    %cst_40 = arith.constant 0.000000e+00 : f32
    %153 = vector.broadcast %cst_40 : f32 to vector<16x1xf32>
    %154 = arith.subf %153, %152 : vector<16x1xf32>
    %155 = math.exp %154 : vector<16x1xf32>
    %cst_41 = arith.constant 1.000000e+00 : f32
    %156 = vector.broadcast %cst_41 : f32 to vector<16x1xf32>
    %157 = arith.addf %156, %155 : vector<16x1xf32>
    %158 = math.log %157 : vector<16x1xf32>
    %159 = arith.subf %151, %158 : vector<16x1xf32>
    %cst_42 = arith.constant 0.000000e+00 : f32
    %160 = vector.broadcast %cst_42 : f32 to vector<16x1xf32>
    %161 = arith.subf %160, %159 : vector<16x1xf32>
    %162 = vector.shape_cast %161 : vector<16x1xf32> to vector<1x16x1xf32>
    %cst_43 = arith.constant dense<0.000000e+00> : vector<1xf32>
    %163 = vector.multi_reduction <add>, %162, %cst_43 [1, 2] : vector<1x16x1xf32> to vector<1xf32>
    %164 = vector.shape_cast %163 : vector<1xf32> to vector<1x1x1xf32>
    %165 = vector.extract %164[0, 0, 0] : f32 from vector<1x1x1xf32>
    %166 = arith.addf %134, %165 : f32
    %c0_44 = arith.constant 0 : index
    %c1 = arith.constant 1 : index
    %167 = memref.load %arg4[%c0_44, %c1] : memref<1x2xf32, #tpu.memory_space<smem>>
    memref.store %166, %arg4[%c0_44, %c1] : memref<1x2xf32, #tpu.memory_space<smem>>
    return
  }
  func.func @transform_0(%arg0: i32) -> (i32, i32) {
    %c0_i32 = arith.constant 0 : i32
    %c0_i32_0 = arith.constant 0 : i32
    return %arg0, %c0_i32 : i32, i32
  }
  func.func @transform_1(%arg0: i32) -> (i32, i32) {
    %c0_i32 = arith.constant 0 : i32
    %c0_i32_0 = arith.constant 0 : i32
    %c0_i32_1 = arith.constant 0 : i32
    return %c0_i32, %c0_i32_0 : i32, i32
  }
  func.func @transform_2(%arg0: i32) -> (i32, i32) {
    %c0_i32 = arith.constant 0 : i32
    %c0_i32_0 = arith.constant 0 : i32
    %c0_i32_1 = arith.constant 0 : i32
    return %c0_i32, %c0_i32_0 : i32, i32
  }
  func.func @transform_3(%arg0: i32) -> (i32, i32) {
    %c0_i32 = arith.constant 0 : i32
    %c0_i32_0 = arith.constant 0 : i32
    return %arg0, %c0_i32 : i32, i32
  }
}

</mosaic_0001>

<llo_original>
// kernel: tpu_custom_call.1
$region0: #{tpu_custom_call.1}
  #allocation0 [shape = 'u32[]', space=smem, size = 0x4, offset = 0x4, fixed_abs, tag = 'smem constant byte address 0x4 - core index']
  #allocation1 [shape = 'u32[72,128]{1,0:T(1,128)}', space=vmem, size = 0x9000, scoped, tag = 'internal scratch']
  %s0 = inlined_call_operand.hbm [shape: s32[16,10], index: 0, kind: input, shape index: {}]
  %s1 = inlined_call_operand.hbm [shape: bf16[128,128], index: 1, kind: input, shape index: {}]
  %s2 = inlined_call_operand.hbm [shape: bf16[128,128], index: 2, kind: input, shape index: {}]
  %s3 = inlined_call_operand.hbm [shape: f32[1,2], index: 3, kind: output, shape index: {}]
  %s4 = sld [smem:[#allocation0]]
  $region34: #{tpu_custom_call.1} parent=0
    _
  %s6 = ssub.s32 1, %s4
  %s7 = scalar_select 0, %s6, %s4
  $region1: #{tpu_custom_call.1} parent=0
    #allocation2 [shape = 'u8[8192]{0}', space=vmem, size = 0x2000, scoped, tag = 'input window, operand 0, single buffered']
    #allocation3 [shape = 's32[1]{0}', space=sflag, size = 0x4, scoped, tag = 'scoped memory for tpu_custom_call.1']
    #allocation4 [shape = 's32[1]{0}', space=sflag, size = 0x4, scoped, tag = 'scoped memory for tpu_custom_call.1']
    #allocation5 [shape = 'u8[32768]{0}', space=vmem, size = 0x8000, scoped, tag = 'input window, operand 1, single buffered']
    #allocation6 [shape = 's32[1]{0}', space=sflag, size = 0x4, scoped, tag = 'scoped memory for tpu_custom_call.1']
    #allocation7 [shape = 'u8[32768]{0}', space=vmem, size = 0x8000, scoped, tag = 'input window, operand 2, single buffered']
    #allocation8 [shape = 'u8[512]{0}', space=smem, size = 0x200, scoped, tag = 'output window, operand 0, single buffered']
    %8 = vsyncpa [#allocation3], 0
    %9 = vsyncpa [#allocation6], 0
    %10 = vsyncpa [#allocation4], 0
    // Predicated region
    $region2: #{tpu_custom_call.1} parent=1 // pred_check
      _
    $region3: #{tpu_custom_call.1} parent=1 // pred_check_branch
      %12 = sbr.rel (0) target = $region5
    $region4: #{tpu_custom_call.1} parent=1 // pred_region
      %14 = vsyncadd [#allocation3], 0
      %s15 = sshll.u32 %s0, 4
      %s16 = int_to_ptr.hbm [resolvable:$true] %s15
      %s17 = sshll.u32 [#allocation2], 4
      %s18 = int_to_ptr.vmem [resolvable:$true] %s17
      %23 = dma.hbm_to_vmem [thread:$0]  %s16, 256, %s18, [#allocation3], 128, 128, 8
    $region5: #{tpu_custom_call.1} parent=1 // pred_fallthru
      _
    // Predicated region
    $region6: #{tpu_custom_call.1} parent=1 // pred_check
      _
    $region7: #{tpu_custom_call.1} parent=1 // pred_check_branch
      %25 = sbr.rel (0) target = $region9
    $region8: #{tpu_custom_call.1} parent=1 // pred_region
      %27 = vsyncadd [#allocation6], 0
      %s28 = sshll.u32 %s1, 4
      %s29 = int_to_ptr.hbm [resolvable:$true] %s28
      %s30 = sshll.u32 [#allocation5], 4
      %s31 = int_to_ptr.vmem [resolvable:$true] %s30
      %36 = dma.hbm_to_vmem [thread:$0]  %s29, 1024, %s31, [#allocation6], 64, 64, 4
    $region9: #{tpu_custom_call.1} parent=1 // pred_fallthru
      _
    // Predicated region
    $region10: #{tpu_custom_call.1} parent=1 // pred_check
      _
    $region11: #{tpu_custom_call.1} parent=1 // pred_check_branch
      %38 = sbr.rel (0) target = $region13
    $region12: #{tpu_custom_call.1} parent=1 // pred_region
      %40 = vsyncadd [#allocation6], 0
      %s41 = sshll.u32 %s2, 4
      %s42 = int_to_ptr.hbm [resolvable:$true] %s41
      %s43 = sshll.u32 [#allocation7], 4
      %s44 = int_to_ptr.vmem [resolvable:$true] %s43
      %49 = dma.hbm_to_vmem [thread:$0]  %s42, 1024, %s44, [#allocation6], 64, 64, 4
    $region13: #{tpu_custom_call.1} parent=1 // pred_fallthru
      _
    // Predicated region
    $region14: #{tpu_custom_call.1} parent=1 // pred_check
      _
    $region15: #{tpu_custom_call.1} parent=1 // pred_check_branch
      %51 = sbr.rel (0) target = $region17
    $region16: #{tpu_custom_call.1} parent=1 // pred_region
      %53 = dma.done [#allocation3], 256
    $region17: #{tpu_custom_call.1} parent=1 // pred_fallthru
      _
    // Predicated region
    $region18: #{tpu_custom_call.1} parent=1 // pred_check
      _
    $region19: #{tpu_custom_call.1} parent=1 // pred_check_branch
      %55 = sbr.rel (0) target = $region21
    $region20: #{tpu_custom_call.1} parent=1 // pred_region
      %57 = dma.done [#allocation6], 1024
    $region21: #{tpu_custom_call.1} parent=1 // pred_fallthru
      _
    // Predicated region
    $region22: #{tpu_custom_call.1} parent=1 // pred_check
      _
    $region23: #{tpu_custom_call.1} parent=1 // pred_check_branch
      %59 = sbr.rel (0) target = $region25
    $region24: #{tpu_custom_call.1} parent=1 // pred_region
      %61 = dma.done [#allocation6], 1024
    $region25: #{tpu_custom_call.1} parent=1 // pred_fallthru
      _
    %v62 = vld [vmem:[#allocation2] sm:$0xff]
    %v63 = vld [vmem:[#allocation2 + $0x8] sm:$0xff]
    %v64 = vlaneseq
    %v65 = vand.u32 %v64, 127
    %66 = vset.pattern.permute.xlu0 0
    %67 = vperm.xlu0 %66, %v62
    %v68 = vpop.permute.xlu0 %67
    %69 = vset.pattern.permute.xlu0 0
    %70 = vperm.xlu0 %69, %v63
    %v71 = vpop.permute.xlu0 %70
    %vm72 = vcmp.eq.s32.totalorder %v65, %v68
    %vm73 = vcmp.eq.s32.totalorder %v65, %v71
    %v74 = vsel %vm72, 1, 0
    %v75 = vsel %vm73, 1, 0
    %v76 = vcvt.s32.f32 %v74
    %v77 = vcvt.s32.f32 %v75
    %v78 = vpack.c.bf16 %v77, %v76
    %v79 = vld [vmem:[#allocation5] sm:$0xf]
    %v80 = vld [vmem:[#allocation5 + $0x4] sm:$0xf]
    %v81 = vld [vmem:[#allocation5 + $0x8] sm:$0xf]
    %v82 = vld [vmem:[#allocation5 + $0xc] sm:$0xf]
    %v83 = vld [vmem:[#allocation5 + $0x10] sm:$0xf]
    %v84 = vld [vmem:[#allocation5 + $0x14] sm:$0xf]
    %v85 = vld [vmem:[#allocation5 + $0x18] sm:$0xf]
    %v86 = vld [vmem:[#allocation5 + $0x1c] sm:$0xf]
    %v87 = vld [vmem:[#allocation5 + $0x20] sm:$0xf]
    %v88 = vld [vmem:[#allocation5 + $0x24] sm:$0xf]
    %v89 = vld [vmem:[#allocation5 + $0x28] sm:$0xf]
    %v90 = vld [vmem:[#allocation5 + $0x2c] sm:$0xf]
    %v91 = vld [vmem:[#allocation5 + $0x30] sm:$0xf]
    %v92 = vld [vmem:[#allocation5 + $0x34] sm:$0xf]
    %v93 = vld [vmem:[#allocation5 + $0x38] sm:$0xf]
    %v94 = vld [vmem:[#allocation5 + $0x3c] sm:$0xf]
    %v111 = vunpack.c.l.b16 %v79
    %v112 = vunpack.c.l.b16 %v80
    %v113 = vunpack.c.l.b16 %v81
    %v114 = vunpack.c.l.b16 %v82
    %v115 = vunpack.c.l.b16 %v83
    %v116 = vunpack.c.l.b16 %v84
    %v117 = vunpack.c.l.b16 %v85
    %v118 = vunpack.c.l.b16 %v86
    %v119 = vunpack.c.l.b16 %v87
    %v120 = vunpack.c.l.b16 %v88
    %v121 = vunpack.c.l.b16 %v89
    %v122 = vunpack.c.l.b16 %v90
    %v123 = vunpack.c.l.b16 %v91
    %v124 = vunpack.c.l.b16 %v92
    %v125 = vunpack.c.l.b16 %v93
    %v126 = vunpack.c.l.b16 %v94
    %v127 = vpack.c.b16 %v112, %v111
    %v128 = vpack.c.b16 %v114, %v113
    %v129 = vpack.c.b16 %v116, %v115
    %v130 = vpack.c.b16 %v118, %v117
    %v131 = vpack.c.b16 %v120, %v119
    %v132 = vpack.c.b16 %v122, %v121
    %v133 = vpack.c.b16 %v124, %v123
    %v134 = vpack.c.b16 %v126, %v125
    %143 = vmatpush.bf16.msra.mxu0 %v134
    %144 = vmatpush.bf16.msra.mxu0 %v133
    %145 = vmatpush.bf16.msra.mxu0 %v132
    %146 = vmatpush.bf16.msra.mxu0 %v131
    %147 = vmatpush.bf16.msra.mxu0 %v130
    %148 = vmatpush.bf16.msra.mxu0 %v129
    %149 = vmatpush.bf16.msra.mxu0 %v128
    %150 = vmatpush.bf16.msra.mxu0 %v127
    %151 = vmatmul.bf16.gmra.mxu0 %v78
    %v152 = vpop.f32.mrf.mxu0
    %v153 = vadd.f32 0.0, %v152
    %v154 = vpop.f32.mrf.mxu0
    %v155 = vadd.f32 0.0, %v154
    %156 = vdwg.mxu0
    %v157 = vpack.c.bf16 %v155, %v153
    %v158 = vld [vmem:[#allocation7] sm:$0xf]
    %v159 = vld [vmem:[#allocation7 + $0x4] sm:$0xf]
    %v160 = vld [vmem:[#allocation7 + $0x8] sm:$0xf]
    %v161 = vld [vmem:[#allocation7 + $0xc] sm:$0xf]
    %v162 = vld [vmem:[#allocation7 + $0x10] sm:$0xf]
    %v163 = vld [vmem:[#allocation7 + $0x14] sm:$0xf]
    %v164 = vld [vmem:[#allocation7 + $0x18] sm:$0xf]
    %v165 = vld [vmem:[#allocation7 + $0x1c] sm:$0xf]
    %v166 = vld [vmem:[#allocation7 + $0x20] sm:$0xf]
    %v167 = vld [vmem:[#allocation7 + $0x24] sm:$0xf]
    %v168 = vld [vmem:[#allocation7 + $0x28] sm:$0xf]
    %v169 = vld [vmem:[#allocation7 + $0x2c] sm:$0xf]
    %v170 = vld [vmem:[#allocation7 + $0x30] sm:$0xf]
    %v171 = vld [vmem:[#allocation7 + $0x34] sm:$0xf]
    %v172 = vld [vmem:[#allocation7 + $0x38] sm:$0xf]
    %v173 = vld [vmem:[#allocation7 + $0x3c] sm:$0xf]
    %v190 = vunpack.c.l.b16 %v158
    %v191 = vunpack.c.l.b16 %v159
    %v192 = vunpack.c.l.b16 %v160
    %v193 = vunpack.c.l.b16 %v161
    %v194 = vunpack.c.l.b16 %v162
    %v195 = vunpack.c.l.b16 %v163
    %v196 = vunpack.c.l.b16 %v164
    %v197 = vunpack.c.l.b16 %v165
    %v198 = vunpack.c.l.b16 %v166
    %v199 = vunpack.c.l.b16 %v167
    %v200 = vunpack.c.l.b16 %v168
    %v201 = vunpack.c.l.b16 %v169
    %v202 = vunpack.c.l.b16 %v170
    %v203 = vunpack.c.l.b16 %v171
    %v204 = vunpack.c.l.b16 %v172
    %v205 = vunpack.c.l.b16 %v173
    %v206 = vpack.c.b16 %v191, %v190
    %v207 = vpack.c.b16 %v193, %v192
    %v208 = vpack.c.b16 %v195, %v194
    %v209 = vpack.c.b16 %v197, %v196
    %v210 = vpack.c.b16 %v199, %v198
    %v211 = vpack.c.b16 %v201, %v200
    %v212 = vpack.c.b16 %v203, %v202
    %v213 = vpack.c.b16 %v205, %v204
    %222 = vmatpush.bf16.msra.mxu0 %v213
    %223 = vmatpush.bf16.msra.mxu0 %v212
    %224 = vmatpush.bf16.msra.mxu0 %v211
    %225 = vmatpush.bf16.msra.mxu0 %v210
    %226 = vmatpush.bf16.msra.mxu0 %v209
    %227 = vmatpush.bf16.msra.mxu0 %v208
    %228 = vmatpush.bf16.msra.mxu0 %v207
    %229 = vmatpush.bf16.msra.mxu0 %v206
    %230 = vmatmul.bf16.gmra.mxu0 %v157
    %v231 = vpop.f32.mrf.mxu0
    %v232 = vadd.f32 0.0, %v231
    %v233 = vpop.f32.mrf.mxu0
    %v234 = vadd.f32 0.0, %v233
    %235 = vdwg.mxu0
    %236 = vset.pattern.permute.xlu0 1
    %237 = vperm.xlu0 %236, %v62
    %v238 = vpop.permute.xlu0 %237
    %239 = vset.pattern.permute.xlu0 1
    %240 = vperm.xlu0 %239, %v63
    %v241 = vpop.permute.xlu0 %240
    %vm242 = vcmp.eq.s32.totalorder %v65, %v238
    %vm243 = vcmp.eq.s32.totalorder %v65, %v241
    %v244 = vsel %vm242, %v232, 0.0
    %v245 = vsel %vm243, %v234, 0.0
    %246 = vadd.xlane.f32.xlu0 %v244
    %v247 = vpop.xlane.xlu0 %246
    %248 = vadd.xlane.f32.xlu0 %v245
    %v249 = vpop.xlane.xlu0 %248
    %v250 = vmin.f32 %v247, 0.0
    %v251 = vmin.f32 %v249, 0.0
    %v252 = vand.u32 2147483647, %v247
    %v253 = vand.u32 2147483647, %v249
    %v254 = vsub.f32 0.0, %v252
    %v255 = vsub.f32 0.0, %v253
    %v256 = vmul.f32 %v254, 1.442695
    %v257 = vpow.pop %v256
    %v258 = vmul.f32 %v255, 1.442695
    %v259 = vpow.pop %v258
    %v260 = vadd.f32 %v257, 1.0
    %v261 = vadd.f32 %v259, 1.0
    %v262 = vlog2.pop %v260
    %v263 = vmul.f32 %v262, 0.6931472
    %v264 = vlog2.pop %v261
    %v265 = vmul.f32 %v264, 0.6931472
    %v266 = vsub.f32 %v250, %v263
    %v267 = vsub.f32 %v251, %v265
    %v268 = vsub.f32 0.0, %v266
    %v269 = vsub.f32 0.0, %v267
    %vm270 = vcmask 7168
    %v271 = vsel %vm270, %v268, 0.0
    %v272 = vsel %vm270, %v269, 0.0
    %v273 = vadd.f32 %v271, %v272
    %274 = vadd.xlane.f32.xlu0 %v273
    %v275 = vpop.xlane.xlu0 %274
    %v276 = vrot.slane %v275, 4
    %v277 = vadd.f32 %v275, %v276
    %v278 = vrot.slane %v277, 2
    %v279 = vadd.f32 %v277, %v278
    %v280 = vrot.slane %v279, 1
    %v281 = vadd.f32 %v279, %v280
    %s282 = vtos %v281
    %s283 = scalar_lea.smem [#allocation8], 0
    %284 = sst [smem:[%s283]] %s282
    %285 = vset.pattern.permute.xlu0 2
    %286 = vperm.xlu0 %285, %v62
    %v287 = vpop.permute.xlu0 %286
    %288 = vset.pattern.permute.xlu0 2
    %289 = vperm.xlu0 %288, %v63
    %v290 = vpop.permute.xlu0 %289
    %vm291 = vcmp.eq.s32.totalorder %v65, %v287
    %vm292 = vcmp.eq.s32.totalorder %v65, %v290
    %v293 = vsel %vm291, 1, 0
    %v294 = vsel %vm292, 1, 0
    %v295 = vcvt.s32.f32 %v293
    %v296 = vcvt.s32.f32 %v294
    %v297 = vcvt.s32.f32 %v62
    %v298 = vcvt.s32.f32 %v63
    %300 = vset.pattern.permute.xlu0 6
    %301 = vperm.xlu0 %300, %v297
    %v302 = vpop.permute.xlu0 %301
    %305 = vset.pattern.permute.xlu0 6
    %306 = vperm.xlu0 %305, %v298
    %v307 = vpop.permute.xlu0 %306
    %v309 = vmul.f32 %v295, %v302
    %v310 = vmul.f32 %v296, %v307
    %v311 = vmul.f32 %v232, %v309
    %v312 = vmul.f32 %v234, %v310
    %313 = vadd.xlane.f32.xlu0 %v311
    %v314 = vpop.xlane.xlu0 %313
    %315 = vadd.xlane.f32.xlu0 %v312
    %v316 = vpop.xlane.xlu0 %315
    %v317 = vsub.f32 0.0, %v314
    %v318 = vsub.f32 0.0, %v316
    %v319 = vmin.f32 %v317, 0.0
    %v320 = vmin.f32 %v318, 0.0
    %v321 = vand.u32 2147483647, %v317
    %v322 = vand.u32 2147483647, %v318
    %v323 = vsub.f32 0.0, %v321
    %v324 = vsub.f32 0.0, %v322
    %v325 = vmul.f32 %v323, 1.442695
    %v326 = vpow.pop %v325
    %v327 = vmul.f32 %v324, 1.442695
    %v328 = vpow.pop %v327
    %v329 = vadd.f32 %v326, 1.0
    %v330 = vadd.f32 %v328, 1.0
    %v331 = vlog2.pop %v329
    %v332 = vmul.f32 %v331, 0.6931472
    %v333 = vlog2.pop %v330
    %v334 = vmul.f32 %v333, 0.6931472
    %v335 = vsub.f32 %v319, %v332
    %v336 = vsub.f32 %v320, %v334
    %v337 = vsub.f32 0.0, %v335
    %v338 = vsub.f32 0.0, %v336
    %v339 = vsel %vm270, %v337, 0.0
    %v340 = vsel %vm270, %v338, 0.0
    %v341 = vadd.f32 %v339, %v340
    %342 = vadd.xlane.f32.xlu0 %v341
    %v343 = vpop.xlane.xlu0 %342
    %v344 = vrot.slane %v343, 4
    %v345 = vadd.f32 %v343, %v344
    %v346 = vrot.slane %v345, 2
    %v347 = vadd.f32 %v345, %v346
    %v348 = vrot.slane %v347, 1
    %v349 = vadd.f32 %v347, %v348
    %s350 = vtos %v349
    %s351 = sadd.f32 %s350, 0.0
    %352 = vset.pattern.permute.xlu0 3
    %353 = vperm.xlu0 %352, %v62
    %v354 = vpop.permute.xlu0 %353
    %355 = vset.pattern.permute.xlu0 3
    %356 = vperm.xlu0 %355, %v63
    %v357 = vpop.permute.xlu0 %356
    %vm358 = vcmp.eq.s32.totalorder %v65, %v354
    %vm359 = vcmp.eq.s32.totalorder %v65, %v357
    %v360 = vsel %vm358, 1, 0
    %v361 = vsel %vm359, 1, 0
    %v362 = vcvt.s32.f32 %v360
    %v363 = vcvt.s32.f32 %v361
    %364 = vset.pattern.permute.xlu0 7
    %365 = vperm.xlu0 %364, %v297
    %v366 = vpop.permute.xlu0 %365
    %368 = vset.pattern.permute.xlu0 7
    %369 = vperm.xlu0 %368, %v298
    %v370 = vpop.permute.xlu0 %369
    %v372 = vmul.f32 %v362, %v366
    %v373 = vmul.f32 %v363, %v370
    %v374 = vmul.f32 %v232, %v372
    %v375 = vmul.f32 %v234, %v373
    %376 = vadd.xlane.f32.xlu0 %v374
    %v377 = vpop.xlane.xlu0 %376
    %378 = vadd.xlane.f32.xlu0 %v375
    %v379 = vpop.xlane.xlu0 %378
    %v380 = vsub.f32 0.0, %v377
    %v381 = vsub.f32 0.0, %v379
    %v382 = vmin.f32 %v380, 0.0
    %v383 = vmin.f32 %v381, 0.0
    %v384 = vand.u32 2147483647, %v380
    %v385 = vand.u32 2147483647, %v381
    %v386 = vsub.f32 0.0, %v384
    %v387 = vsub.f32 0.0, %v385
    %v388 = vmul.f32 %v386, 1.442695
    %v389 = vpow.pop %v388
    %v390 = vmul.f32 %v387, 1.442695
    %v391 = vpow.pop %v390
    %v392 = vadd.f32 %v389, 1.0
    %v393 = vadd.f32 %v391, 1.0
    %v394 = vlog2.pop %v392
    %v395 = vmul.f32 %v394, 0.6931472
    %v396 = vlog2.pop %v393
    %v397 = vmul.f32 %v396, 0.6931472
    %v398 = vsub.f32 %v382, %v395
    %v399 = vsub.f32 %v383, %v397
    %v400 = vsub.f32 0.0, %v398
    %v401 = vsub.f32 0.0, %v399
    %v402 = vsel %vm270, %v400, 0.0
    %v403 = vsel %vm270, %v401, 0.0
    %v404 = vadd.f32 %v402, %v403
    %405 = vadd.xlane.f32.xlu0 %v404
    %v406 = vpop.xlane.xlu0 %405
    %v407 = vrot.slane %v406, 4
    %v408 = vadd.f32 %v406, %v407
    %v409 = vrot.slane %v408, 2
    %v410 = vadd.f32 %v408, %v409
    %v411 = vrot.slane %v410, 1
    %v412 = vadd.f32 %v410, %v411
    %s413 = vtos %v412
    %s414 = sadd.f32 %s351, %s413
    %415 = vset.pattern.permute.xlu0 4
    %416 = vperm.xlu0 %415, %v62
    %v417 = vpop.permute.xlu0 %416
    %418 = vset.pattern.permute.xlu0 4
    %419 = vperm.xlu0 %418, %v63
    %v420 = vpop.permute.xlu0 %419
    %vm421 = vcmp.eq.s32.totalorder %v65, %v417
    %vm422 = vcmp.eq.s32.totalorder %v65, %v420
    %v423 = vsel %vm421, 1, 0
    %v424 = vsel %vm422, 1, 0
    %v425 = vcvt.s32.f32 %v423
    %v426 = vcvt.s32.f32 %v424
    %427 = vset.pattern.permute.xlu0 8
    %428 = vperm.xlu0 %427, %v297
    %v429 = vpop.permute.xlu0 %428
    %431 = vset.pattern.permute.xlu0 8
    %432 = vperm.xlu0 %431, %v298
    %v433 = vpop.permute.xlu0 %432
    %v435 = vmul.f32 %v425, %v429
    %v436 = vmul.f32 %v426, %v433
    %v437 = vmul.f32 %v232, %v435
    %v438 = vmul.f32 %v234, %v436
    %439 = vadd.xlane.f32.xlu0 %v437
    %v440 = vpop.xlane.xlu0 %439
    %441 = vadd.xlane.f32.xlu0 %v438
    %v442 = vpop.xlane.xlu0 %441
    %v443 = vsub.f32 0.0, %v440
    %v444 = vsub.f32 0.0, %v442
    %v445 = vmin.f32 %v443, 0.0
    %v446 = vmin.f32 %v444, 0.0
    %v447 = vand.u32 2147483647, %v443
    %v448 = vand.u32 2147483647, %v444
    %v449 = vsub.f32 0.0, %v447
    %v450 = vsub.f32 0.0, %v448
    %v451 = vmul.f32 %v449, 1.442695
    %v452 = vpow.pop %v451
    %v453 = vmul.f32 %v450, 1.442695
    %v454 = vpow.pop %v453
    %v455 = vadd.f32 %v452, 1.0
    %v456 = vadd.f32 %v454, 1.0
    %v457 = vlog2.pop %v455
    %v458 = vmul.f32 %v457, 0.6931472
    %v459 = vlog2.pop %v456
    %v460 = vmul.f32 %v459, 0.6931472
    %v461 = vsub.f32 %v445, %v458
    %v462 = vsub.f32 %v446, %v460
    %v463 = vsub.f32 0.0, %v461
    %v464 = vsub.f32 0.0, %v462
    %v465 = vsel %vm270, %v463, 0.0
    %v466 = vsel %vm270, %v464, 0.0
    %v467 = vadd.f32 %v465, %v466
    %468 = vadd.xlane.f32.xlu0 %v467
    %v469 = vpop.xlane.xlu0 %468
    %v470 = vrot.slane %v469, 4
    %v471 = vadd.f32 %v469, %v470
    %v472 = vrot.slane %v471, 2
    %v473 = vadd.f32 %v471, %v472
    %v474 = vrot.slane %v473, 1
    %v475 = vadd.f32 %v473, %v474
    %s476 = vtos %v475
    %s477 = sadd.f32 %s414, %s476
    %478 = vset.pattern.permute.xlu0 5
    %479 = vperm.xlu0 %478, %v62
    %v480 = vpop.permute.xlu0 %479
    %481 = vset.pattern.permute.xlu0 5
    %482 = vperm.xlu0 %481, %v63
    %v483 = vpop.permute.xlu0 %482
    %vm484 = vcmp.eq.s32.totalorder %v65, %v480
    %vm485 = vcmp.eq.s32.totalorder %v65, %v483
    %v486 = vsel %vm484, 1, 0
    %v487 = vsel %vm485, 1, 0
    %v488 = vcvt.s32.f32 %v486
    %v489 = vcvt.s32.f32 %v487
    %490 = vset.pattern.permute.xlu0 9
    %491 = vperm.xlu0 %490, %v297
    %v492 = vpop.permute.xlu0 %491
    %494 = vset.pattern.permute.xlu0 9
    %495 = vperm.xlu0 %494, %v298
    %v496 = vpop.permute.xlu0 %495
    %v498 = vmul.f32 %v488, %v492
    %v499 = vmul.f32 %v489, %v496
    %v500 = vmul.f32 %v232, %v498
    %v501 = vmul.f32 %v234, %v499
    %502 = vadd.xlane.f32.xlu0 %v500
    %v503 = vpop.xlane.xlu0 %502
    %504 = vadd.xlane.f32.xlu0 %v501
    %v505 = vpop.xlane.xlu0 %504
    %v506 = vsub.f32 0.0, %v503
    %v507 = vsub.f32 0.0, %v505
    %v508 = vmin.f32 %v506, 0.0
    %v509 = vmin.f32 %v507, 0.0
    %v510 = vand.u32 2147483647, %v506
    %v511 = vand.u32 2147483647, %v507
    %v512 = vsub.f32 0.0, %v510
    %v513 = vsub.f32 0.0, %v511
    %v514 = vmul.f32 %v512, 1.442695
    %v515 = vpow.pop %v514
    %v516 = vmul.f32 %v513, 1.442695
    %v517 = vpow.pop %v516
    %v518 = vadd.f32 %v515, 1.0
    %v519 = vadd.f32 %v517, 1.0
    %v520 = vlog2.pop %v518
    %v521 = vmul.f32 %v520, 0.6931472
    %v522 = vlog2.pop %v519
    %v523 = vmul.f32 %v522, 0.6931472
    %v524 = vsub.f32 %v508, %v521
    %v525 = vsub.f32 %v509, %v523
    %v526 = vsub.f32 0.0, %v524
    %v527 = vsub.f32 0.0, %v525
    %v528 = vsel %vm270, %v526, 0.0
    %v529 = vsel %vm270, %v527, 0.0
    %v530 = vadd.f32 %v528, %v529
    %531 = vadd.xlane.f32.xlu0 %v530
    %v532 = vpop.xlane.xlu0 %531
    %v533 = vrot.slane %v532, 4
    %v534 = vadd.f32 %v532, %v533
    %v535 = vrot.slane %v534, 2
    %v536 = vadd.f32 %v534, %v535
    %v537 = vrot.slane %v536, 1
    %v538 = vadd.f32 %v536, %v537
    %s539 = vtos %v538
    %s540 = sadd.f32 %s477, %s539
    %s541 = scalar_lea.smem [#allocation8], 1
    %542 = sst [smem:[%s541]] %s540
    // Predicated region
    $region26: #{tpu_custom_call.1} parent=1 // pred_check
      _
    $region27: #{tpu_custom_call.1} parent=1 // pred_check_branch
      %544 = sbr.rel (0) target = $region29
    $region28: #{tpu_custom_call.1} parent=1 // pred_region
      %546 = vsyncadd [#allocation4], 0
      %s548 = sshll.u32 %s3, 4
      %s549 = int_to_ptr.hbm [resolvable:$true] %s548
      %551 = dma.smem_to_hbm [#allocation8], 16, %s549, [#allocation4]
    $region29: #{tpu_custom_call.1} parent=1 // pred_fallthru
      _
    // Predicated region
    $region30: #{tpu_custom_call.1} parent=1 // pred_check
      _
    $region31: #{tpu_custom_call.1} parent=1 // pred_check_branch
      %553 = sbr.rel (0) target = $region33
    $region32: #{tpu_custom_call.1} parent=1 // pred_region
      %555 = dma.done [#allocation4], 16
    $region33: #{tpu_custom_call.1} parent=1 // pred_fallthru
      _
    %556 = sfence
    %557 = vsyncpa [#allocation3], 1
    %558 = vsyncpa [#allocation6], 1
    %559 = vsyncpa [#allocation4], 1

</llo_original>
